<compile_context>
chip_gen: v7x
topology: tpu7x:2x2x1
jax: 0.10.0
libtpu: 0.0.40
codegen_flags: <defaults>
</compile_context>

<pallas_src>
import functools

import jax
import jax.numpy as jnp
from jax.experimental import pallas as pl
from jax.experimental.pallas import tpu as pltpu


# --------------------------------------------------------------------------
# Chip-aware defaults
# --------------------------------------------------------------------------
def _tpu_defaults():
    """Return (vmem_budget_bytes, tensorcores_per_chip) for the local TPU."""
    vmem_phys = 128 << 20
    cores = 1
    try:
        info = pltpu.get_tpu_info()
        v = int(getattr(info, "vmem_capacity_bytes", 0) or 0)
        if v > 0:
            vmem_phys = v
    except Exception:
        pass
    try:
        kind = jax.devices()[0].device_kind.lower()
        if ("v7" in kind) or ("tpu7" in kind):
            cores = 2
            vmem_phys = min(vmem_phys, 64 << 20)
    except Exception:
        pass
    # Leave headroom for compiler scratch; cap at ~100 MiB on 128 MiB chips.
    budget = min(100 << 20, max(32 << 20, vmem_phys - (12 << 20)))
    return int(budget), int(cores)


# --------------------------------------------------------------------------
# Path 1: single-pass kernel (whole (Bt, C, HW) slab resident per grid step)
# --------------------------------------------------------------------------
def _ca_single_kernel(x_ref, w1t_ref, b1_ref, w2t_ref, b2_ref, o_ref):
    xb = x_ref[...]                                    # (Bt, C, HW), native dtype

    # AdaptiveMaxPool2d(1): exact in the native dtype (no f32 slab copy).
    max_p = jnp.max(xb, axis=-1).astype(jnp.float32)   # (Bt, C)
    # AdaptiveAvgPool2d(1): f32 accumulation (the only wide temporary).
    avg_p = jnp.sum(xb.astype(jnp.float32), axis=-1) * (1.0 / xb.shape[-1])

    w1t = w1t_ref[...].astype(jnp.float32)             # (C, Cr)
    b1 = b1_ref[...].astype(jnp.float32)               # (1, Cr)
    w2t = w2t_ref[...].astype(jnp.float32)             # (Cr, C)
    b2 = b2_ref[...].astype(jnp.float32)               # (1, C)

    def mlp(p):                                        # shared 1x1-conv MLP
        h = jnp.maximum(jnp.dot(p, w1t, preferred_element_type=jnp.float32) + b1, 0.0)
        return jnp.dot(h, w2t, preferred_element_type=jnp.float32) + b2

    y = jax.nn.sigmoid(mlp(max_p) + mlp(avg_p))        # (Bt, C)
    o_ref[...] = (xb * y[:, :, None].astype(xb.dtype)).astype(o_ref.dtype)


def _ca_single_pass(xf, w1, b1, w2, b2, *, bt, vmem_limit_bytes):
    B, C, HW = xf.shape
    Cr = w1.shape[0]
    itemsize = xf.dtype.itemsize

    # Tiny weight transposes / reshapes done once in XLA (row-oriented MLP).
    w1t = jnp.transpose(w1)            # (C, Cr)
    w2t = jnp.transpose(w2)            # (Cr, C)
    b1r = b1.reshape(1, Cr)
    b2r = b2.reshape(1, C)

    weight_bytes = int((w1.size + b1.size + w2.size + b2.size) * w1.dtype.itemsize)
    flops = int(B * (3 * C * HW + 8 * C * Cr))
    bytes_accessed = int(2 * B * C * HW * itemsize + weight_bytes)

    return pl.pallas_call(
        _ca_single_kernel,
        out_shape=jax.ShapeDtypeStruct((B, C, HW), xf.dtype),
        grid_spec=pltpu.PrefetchScalarGridSpec(
            num_scalar_prefetch=0,
            grid=(B // bt,),
            in_specs=[
                pl.BlockSpec((bt, C, HW), lambda i: (i, 0, 0)),   # x slab
                pl.BlockSpec((C, Cr), lambda i: (0, 0)),           # W1^T
                pl.BlockSpec((1, Cr), lambda i: (0, 0)),           # b1 (row)
                pl.BlockSpec((Cr, C), lambda i: (0, 0)),           # W2^T
                pl.BlockSpec((1, C), lambda i: (0, 0)),            # b2 (row)
            ],
            out_specs=pl.BlockSpec((bt, C, HW), lambda i: (i, 0, 0)),
        ),
        input_output_aliases={0: 0},
        compiler_params=pltpu.CompilerParams(
            dimension_semantics=("parallel",),
            vmem_limit_bytes=int(vmem_limit_bytes)),
        cost_estimate=pl.CostEstimate(
            flops=flops, transcendentals=int(B * C),
            bytes_accessed=bytes_accessed),
    )(xf, w1t, b1r, w2t, b2r)


# --------------------------------------------------------------------------
# Path 2: two-phase fallback (tiled reduce + fused gate MLP -> tiled scale)
# --------------------------------------------------------------------------
def _make_reduce_gate_kernel(C, T, HW):
    ragged = (HW % T) != 0
    inv_hw = 1.0 / float(HW)

    def kernel(x_ref, w1_ref, b1_ref, w2_ref, b2_ref, y_ref, max_sc, sum_sc):
        t = pl.program_id(1)

        @pl.when(t == 0)
        def _init():
            max_sc[...] = jnp.full_like(max_sc, -jnp.inf)
            sum_sc[...] = jnp.zeros_like(sum_sc)

        xb = x_ref[0].astype(jnp.float32)                    # (C, T)
        if ragged:
            # Last tile may read past HW (padded reads): mask so max sees
            # -inf and the sum sees 0 for out-of-range lanes.
            col = jax.lax.broadcasted_iota(jnp.int32, (C, T), 1) + t * T
            valid = col < HW
            xm = jnp.where(valid, xb, -jnp.inf)
            xs = jnp.where(valid, xb, 0.0)
        else:
            xm = xb
            xs = xb

        max_sc[...] = jnp.maximum(max_sc[...],
                                  jnp.max(xm, axis=-1, keepdims=True))
        sum_sc[...] = sum_sc[...] + jnp.sum(xs, axis=-1, keepdims=True)

        @pl.when(t == pl.num_programs(1) - 1)
        def _finalize():
            # Gate MLP fused into the reduction finalize (no extra XLA
            # dispatch, no lane-sparse stat round trip).
            max_c = max_sc[...]                              # (C, 1)
            avg_c = sum_sc[...] * inv_hw                     # (C, 1)
            w1 = w1_ref[...].astype(jnp.float32)             # (Cr, C)
            b1 = b1_ref[...].astype(jnp.float32)             # (Cr, 1)
            w2 = w2_ref[...].astype(jnp.float32)             # (C, Cr)
            b2 = b2_ref[...].astype(jnp.float32)             # (C, 1)

            def mlp(p):
                h = jnp.maximum(
                    jnp.dot(w1, p, preferred_element_type=jnp.float32) + b1, 0.0)
                return jnp.dot(w2, h, preferred_element_type=jnp.float32) + b2

            y_ref[0] = jax.nn.sigmoid(mlp(max_c) + mlp(avg_c))   # (C, 1)

    return kernel


def _scale_kernel(x_ref, y_ref, o_ref):
    xb = x_ref[0]                                            # (C, T)
    y = y_ref[0].astype(xb.dtype)                            # (C, 1)
    o_ref[0] = (xb * y).astype(o_ref.dtype)


def _ca_two_phase(xf, w1, b1, w2, b2, *, spatial_tile, vmem_limit_bytes):
    B, C, HW = xf.shape
    Cr = w1.shape[0]
    itemsize = xf.dtype.itemsize

    # Lane-dense spatial tile targeting ~4-8 MiB per block (multiple of 128).
    if spatial_tile is None:
        target = min(8 << 20, max(1 << 20, int(vmem_limit_bytes) // 8))
        T = target // max(1, C * itemsize)
    else:
        T = int(spatial_tile)
    if T >= HW:
        T = HW
    else:
        T = max(128, (T // 128) * 128)
        if T >= HW:
            T = HW
    nT = (HW + T - 1) // T

    # Phase 1: pooled stats + gate MLP per batch element -> y (B, C, 1) f32.
    y = pl.pallas_call(
        _make_reduce_gate_kernel(C, T, HW),
        out_shape=jax.ShapeDtypeStruct((B, C, 1), jnp.float32),
        grid_spec=pltpu.PrefetchScalarGridSpec(
            num_scalar_prefetch=0,
            grid=(B, nT),
            in_specs=[
                pl.BlockSpec((1, C, T), lambda b, t: (b, 0, t)),
                pl.BlockSpec((Cr, C), lambda b, t: (0, 0)),
                pl.BlockSpec((Cr, 1), lambda b, t: (0, 0)),
                pl.BlockSpec((C, Cr), lambda b, t: (0, 0)),
                pl.BlockSpec((C, 1), lambda b, t: (0, 0)),
            ],
            out_specs=pl.BlockSpec((1, C, 1), lambda b, t: (b, 0, 0)),
            scratch_shapes=[pltpu.VMEM((C, 1), jnp.float32),
                            pltpu.VMEM((C, 1), jnp.float32)],
        ),
        compiler_params=pltpu.CompilerParams(
            dimension_semantics=("parallel", "arbitrary"),
            vmem_limit_bytes=int(vmem_limit_bytes)),
        cost_estimate=pl.CostEstimate(
            flops=int(2 * B * C * HW + 8 * B * C * Cr),
            transcendentals=int(B * C),
            bytes_accessed=int(B * C * HW * itemsize + B * C * 4)),
    )(xf, w1, b1, w2, b2)

    # Phase 2: x * gate, fully parallel over (batch, spatial tile).
    out = pl.pallas_call(
        _scale_kernel,
        out_shape=jax.ShapeDtypeStruct((B, C, HW), xf.dtype),
        grid_spec=pltpu.PrefetchScalarGridSpec(
            num_scalar_prefetch=0,
            grid=(B, nT),
            in_specs=[pl.BlockSpec((1, C, T), lambda b, t: (b, 0, t)),
                      pl.BlockSpec((1, C, 1), lambda b, t: (b, 0, 0))],
            out_specs=pl.BlockSpec((1, C, T), lambda b, t: (b, 0, t)),
        ),
        input_output_aliases={0: 0},
        compiler_params=pltpu.CompilerParams(
            dimension_semantics=("parallel", "parallel"),
            vmem_limit_bytes=int(vmem_limit_bytes)),
        cost_estimate=pl.CostEstimate(
            flops=int(B * C * HW), transcendentals=0,
            bytes_accessed=int(2 * B * C * HW * itemsize + B * C * 4)),
    )(xf, y)
    return out


# --------------------------------------------------------------------------
# Public wrapper
# --------------------------------------------------------------------------
@functools.partial(jax.jit,
                   static_argnames=("vmem_budget_bytes", "spatial_tile",
                                    "force_two_phase"))
def ca_forward(x, w1, b1, w2, b2, *,
               vmem_budget_bytes=None,    # None -> chip-aware default
               spatial_tile=None,
               force_two_phase=False):
    """CA forward.  x: (B, C, H, W); 1x1-conv MLP weights with kernel dims
    squeezed: w1 (C//r, C), b1 (C//r, 1), w2 (C, C//r), b2 (C, 1)."""
    B, C, H, W = x.shape
    HW = H * W
    Cr = w1.shape[0]
    b1 = b1.reshape(Cr, 1)
    b2 = b2.reshape(C, 1)
    xf = x.reshape(B, C, HW)

    budget, cores = _tpu_defaults()
    if vmem_budget_bytes is not None:
        budget = int(vmem_budget_bytes)

    itemsize = x.dtype.itemsize
    weight_bytes = int((w1.size + b1.size + w2.size + b2.size) * w1.dtype.itemsize)
    slab_bytes = C * HW * itemsize
    # In-kernel f32 accumulation temporary for narrow dtypes (mean pooling).
    f32_extra = C * HW * 4 if x.dtype != jnp.float32 else 0

    def _need(bt):
        # Double-buffered input + output slabs + f32 temp + weights + slack.
        return 4 * bt * slab_bytes + bt * f32_extra + 2 * weight_bytes + (2 << 20)

    use_single = not force_two_phase
    # Multi-core (v7x) escape hatch: a grid shorter than the core count would
    # idle a TensorCore (half the chip's HBM bandwidth) -> tiled path instead.
    if cores > 1 and B < cores:
        use_single = False

    bt = 0
    if use_single:
        min_steps = max(cores, min(B, 4))          # keep the pipeline busy
        bt_max = max(1, B // min_steps)
        for cand in range(bt_max, 0, -1):
            if B % cand == 0 and _need(cand) <= budget:
                bt = cand
                break
        if bt == 0:
            use_single = False

    if use_single:
        out = _ca_single_pass(xf, w1, b1, w2, b2, bt=bt,
                              vmem_limit_bytes=budget)
    else:
        out = _ca_two_phase(xf, w1, b1, w2, b2,
                            spatial_tile=spatial_tile,
                            vmem_limit_bytes=budget)
    return out.reshape(B, C, H, W)


def _reference(x, w1, b1, w2, b2):
    # Pure-JAX reference matching the PyTorch forward.
    max_p = jnp.max(x, axis=(2, 3))            # (B, C)
    avg_p = jnp.mean(x, axis=(2, 3))           # (B, C)

    def mlp(p):
        h = jnp.maximum(p @ w1.T + b1[:, 0], 0.0)
        return h @ w2.T + b2[:, 0]

    y = jax.nn.sigmoid(mlp(max_p) + mlp(avg_p))    # (B, C)
    return x * y[:, :, None, None]


if __name__ == "__main__":
    key = jax.random.PRNGKey(0)
    kx, kw1, kb1, kw2, kb2, kx2, kx3 = jax.random.split(key, 7)

    B, C, H, W = 2, 8, 16, 16
    reduction = 4
    Cr = C // reduction

    x = jax.random.normal(kx, (B, C, H, W), dtype=jnp.float32)
    # Conv2d(C, Cr, 1) / Conv2d(Cr, C, 1) parameters with kernel dims squeezed.
    w1 = jax.random.normal(kw1, (Cr, C), dtype=jnp.float32) * 0.3
    b1 = jax.random.normal(kb1, (Cr, 1), dtype=jnp.float32) * 0.1
    w2 = jax.random.normal(kw2, (C, Cr), dtype=jnp.float32) * 0.3
    b2 = jax.random.normal(kb2, (C, 1), dtype=jnp.float32) * 0.1

    # Path 1: single-pass (fits the VMEM budget easily at these shapes).
    out = jax.block_until_ready(ca_forward(x, w1, b1, w2, b2))
    ref = _reference(x, w1, b1, w2, b2)
    assert out.shape == x.shape and out.dtype == x.dtype
    assert jnp.allclose(out, ref, atol=1e-5, rtol=1e-5), "single-pass mismatch"

    # Path 1 with batch folding (several batch elements per grid step).
    x3 = jax.random.normal(kx3, (8, C, 8, 8), dtype=jnp.float32)
    out3 = jax.block_until_ready(ca_forward(x3, w1, b1, w2, b2))
    ref3 = _reference(x3, w1, b1, w2, b2)
    assert jnp.allclose(out3, ref3, atol=1e-5, rtol=1e-5), "batched single-pass mismatch"

    # Path 2: two-phase fallback (forced) with a ragged spatial tail
    # (HW = 144, tile = 128) to exercise masked reduce + partial-store scale.
    x2 = jax.random.normal(kx2, (B, C, 12, 12), dtype=jnp.float32)
    out2 = jax.block_until_ready(
        ca_forward(x2, w1, b1, w2, b2, force_two_phase=True, spatial_tile=128))
    ref2 = _reference(x2, w1, b1, w2, b2)
    assert out2.shape == x2.shape and out2.dtype == x2.dtype
    assert jnp.allclose(out2, ref2, atol=1e-5, rtol=1e-5), "two-phase mismatch"

    # bf16 input: exact max pooling, f32 mean + gate, bf16 multiply.
    xb16 = x.astype(jnp.bfloat16)
    outb = jax.block_until_ready(ca_forward(xb16, w1, b1, w2, b2))
    refb = _reference(xb16.astype(jnp.float32), w1, b1, w2, b2)
    assert outb.dtype == jnp.bfloat16
    assert jnp.allclose(outb.astype(jnp.float32), refb, atol=3e-2, rtol=3e-2), \
        "bf16 mismatch"

    print("KERNEL_OK")
</pallas_src>

<mosaic_0001>
module attributes {stable_mosaic.version = 11 : i64} {
  func.func @_ca_single_kernel(%arg0: i32, %arg1: memref<1x8x256xf32, #tpu.memory_space<vmem>>, %arg2: memref<8x2xf32, #tpu.memory_space<vmem>>, %arg3: memref<1x2xf32, #tpu.memory_space<vmem>>, %arg4: memref<2x8xf32, #tpu.memory_space<vmem>>, %arg5: memref<1x8xf32, #tpu.memory_space<vmem>>, %arg6: memref<1x8x256xf32, #tpu.memory_space<vmem>>) attributes {dimension_semantics = [#tpu.dimension_semantics<parallel>], iteration_bounds = array<i64: 2>, scalar_prefetch = 0 : i64, scratch_operands = 0 : i64, tpu.core_type = #tpu.core_type<tc>, window_params = [{transform_indices = @transform_0, window_bounds = array<i64: 1, 8, 256>}, {pipeline_mode = #tpu.pipeline_mode<synchronous>, transform_indices = @transform_1, window_bounds = array<i64: 8, 2>}, {pipeline_mode = #tpu.pipeline_mode<synchronous>, transform_indices = @transform_2, window_bounds = array<i64: 1, 2>}, {pipeline_mode = #tpu.pipeline_mode<synchronous>, transform_indices = @transform_3, window_bounds = array<i64: 2, 8>}, {pipeline_mode = #tpu.pipeline_mode<synchronous>, transform_indices = @transform_4, window_bounds = array<i64: 1, 8>}, {transform_indices = @transform_5, window_bounds = array<i64: 1, 8, 256>}]} {
    %c0 = arith.constant 0 : index
    %c0_0 = arith.constant 0 : index
    %c0_1 = arith.constant 0 : index
    %0 = vector.load %arg1[%c0, %c0_0, %c0_1] : memref<1x8x256xf32, #tpu.memory_space<vmem>>, vector<1x8x256xf32>
    %cst = arith.constant dense<0xFF800000> : vector<1x8xf32>
    %1 = vector.multi_reduction <maximumf>, %0, %cst [2] : vector<1x8x256xf32> to vector<1x8xf32>
    %cst_2 = arith.constant dense<0.000000e+00> : vector<1x8xf32>
    %2 = vector.multi_reduction <add>, %0, %cst_2 [2] : vector<1x8x256xf32> to vector<1x8xf32>
    %cst_3 = arith.constant 3.906250e-03 : f32
    %3 = vector.broadcast %cst_3 : f32 to vector<1x8xf32>
    %4 = arith.mulf %2, %3 : vector<1x8xf32>
    %c0_4 = arith.constant 0 : index
    %c0_5 = arith.constant 0 : index
    %5 = vector.load %arg2[%c0_4, %c0_5] : memref<8x2xf32, #tpu.memory_space<vmem>>, vector<8x2xf32>
    %c0_6 = arith.constant 0 : index
    %c0_7 = arith.constant 0 : index
    %6 = vector.load %arg3[%c0_6, %c0_7] : memref<1x2xf32, #tpu.memory_space<vmem>>, vector<1x2xf32>
    %c0_8 = arith.constant 0 : index
    %c0_9 = arith.constant 0 : index
    %7 = vector.load %arg4[%c0_8, %c0_9] : memref<2x8xf32, #tpu.memory_space<vmem>>, vector<2x8xf32>
    %c0_10 = arith.constant 0 : index
    %c0_11 = arith.constant 0 : index
    %8 = vector.load %arg5[%c0_10, %c0_11] : memref<1x8xf32, #tpu.memory_space<vmem>>, vector<1x8xf32>
    %cst_12 = arith.constant dense<0.000000e+00> : vector<1x2xf32>
    %9 = tpu.matmul %1, %5, %cst_12 {dimension_numbers = #tpu.dot_dimension_numbers<[1], [0], [0], [1], [0, 0, 1, 1], [], []>} : vector<1x8xf32>, vector<8x2xf32>, vector<1x2xf32> -> vector<1x2xf32>
    %10 = arith.addf %9, %6 : vector<1x2xf32>
    %cst_13 = arith.constant 0.000000e+00 : f32
    %11 = vector.broadcast %cst_13 : f32 to vector<1x2xf32>
    %12 = arith.maximumf %10, %11 : vector<1x2xf32>
    %cst_14 = arith.constant dense<0.000000e+00> : vector<1x8xf32>
    %13 = tpu.matmul %12, %7, %cst_14 {dimension_numbers = #tpu.dot_dimension_numbers<[1], [0], [0], [1], [0, 0, 1, 1], [], []>} : vector<1x2xf32>, vector<2x8xf32>, vector<1x8xf32> -> vector<1x8xf32>
    %14 = arith.addf %13, %8 : vector<1x8xf32>
    %cst_15 = arith.constant dense<0.000000e+00> : vector<1x2xf32>
    %15 = tpu.matmul %4, %5, %cst_15 {dimension_numbers = #tpu.dot_dimension_numbers<[1], [0], [0], [1], [0, 0, 1, 1], [], []>} : vector<1x8xf32>, vector<8x2xf32>, vector<1x2xf32> -> vector<1x2xf32>
    %16 = arith.addf %15, %6 : vector<1x2xf32>
    %cst_16 = arith.constant 0.000000e+00 : f32
    %17 = vector.broadcast %cst_16 : f32 to vector<1x2xf32>
    %18 = arith.maximumf %16, %17 : vector<1x2xf32>
    %cst_17 = arith.constant dense<0.000000e+00> : vector<1x8xf32>
    %19 = tpu.matmul %18, %7, %cst_17 {dimension_numbers = #tpu.dot_dimension_numbers<[1], [0], [0], [1], [0, 0, 1, 1], [], []>} : vector<1x2xf32>, vector<2x8xf32>, vector<1x8xf32> -> vector<1x8xf32>
    %20 = arith.addf %19, %8 : vector<1x8xf32>
    %21 = arith.addf %14, %20 : vector<1x8xf32>
    %22 = arith.negf %21 : vector<1x8xf32>
    %23 = math.exp %22 : vector<1x8xf32>
    %cst_18 = arith.constant 1.000000e+00 : f32
    %24 = vector.broadcast %cst_18 : f32 to vector<1x8xf32>
    %25 = arith.addf %24, %23 : vector<1x8xf32>
    %26 = arith.divf %24, %25 : vector<1x8xf32>
    %27 = vector.shape_cast %26 : vector<1x8xf32> to vector<1x8x1xf32>
    %28 = vector.broadcast %27 : vector<1x8x1xf32> to vector<1x8x256xf32>
    %29 = arith.mulf %0, %28 : vector<1x8x256xf32>
    %c0_19 = arith.constant 0 : index
    %c0_20 = arith.constant 0 : index
    %c0_21 = arith.constant 0 : index
    %30 = vector.load %arg6[%c0_19, %c0_20, %c0_21] : memref<1x8x256xf32, #tpu.memory_space<vmem>>, vector<1x8x256xf32>
    tpu.vector_store %arg6[%c0_19, %c0_20, %c0_21], %29 {strides = array<i32>} : memref<1x8x256xf32, #tpu.memory_space<vmem>>, vector<1x8x256xf32>,
    return
  }
  func.func @transform_0(%arg0: i32) -> (i32, i32, i32) {
    %c0_i32 = arith.constant 0 : i32
    %c0_i32_0 = arith.constant 0 : i32
    %c0_i32_1 = arith.constant 0 : i32
    return %arg0, %c0_i32, %c0_i32_0 : i32, i32, i32
  }
  func.func @transform_1(%arg0: i32) -> (i32, i32) {
    %c0_i32 = arith.constant 0 : i32
    %c0_i32_0 = arith.constant 0 : i32
    %c0_i32_1 = arith.constant 0 : i32
    return %c0_i32, %c0_i32_0 : i32, i32
  }
  func.func @transform_2(%arg0: i32) -> (i32, i32) {
    %c0_i32 = arith.constant 0 : i32
    %c0_i32_0 = arith.constant 0 : i32
    %c0_i32_1 = arith.constant 0 : i32
    return %c0_i32, %c0_i32_0 : i32, i32
  }
  func.func @transform_3(%arg0: i32) -> (i32, i32) {
    %c0_i32 = arith.constant 0 : i32
    %c0_i32_0 = arith.constant 0 : i32
    %c0_i32_1 = arith.constant 0 : i32
    return %c0_i32, %c0_i32_0 : i32, i32
  }
  func.func @transform_4(%arg0: i32) -> (i32, i32) {
    %c0_i32 = arith.constant 0 : i32
    %c0_i32_0 = arith.constant 0 : i32
    %c0_i32_1 = arith.constant 0 : i32
    return %c0_i32, %c0_i32_0 : i32, i32
  }
  func.func @transform_5(%arg0: i32) -> (i32, i32, i32) {
    %c0_i32 = arith.constant 0 : i32
    %c0_i32_0 = arith.constant 0 : i32
    %c0_i32_1 = arith.constant 0 : i32
    return %arg0, %c0_i32, %c0_i32_0 : i32, i32, i32
  }
}

</mosaic_0001>

<llo_original>
// kernel: ca_forward.1
$region0: #{ca_forward.1}
  #allocation0 [shape = 'u32[]', space=smem, size = 0x4, offset = 0x4, fixed_abs, tag = 'smem constant byte address 0x4 - core index']
  #allocation1 [shape = 'u32[144,128]{1,0:T(1,128)}', space=vmem, size = 0x12000, scoped, tag = 'internal scratch']
  %s0 = inlined_call_operand.hbm [shape: f32[2,8,256], index: 0, kind: input, shape index: {}, may-alias: {0,5}]
  %s1 = inlined_call_operand.hbm [shape: f32[8,2], index: 1, kind: input, shape index: {}]
  %s2 = inlined_call_operand.hbm [shape: f32[1,2], index: 2, kind: input, shape index: {}]
  %s3 = inlined_call_operand.hbm [shape: f32[2,8], index: 3, kind: input, shape index: {}]
  %s4 = inlined_call_operand.hbm [shape: f32[1,8], index: 4, kind: input, shape index: {}]
  %s5 = inlined_call_operand.hbm [shape: f32[2,8,256], index: 5, kind: output, shape index: {}, may-alias: {0,5}]
  %s6 = sld [smem:[#allocation0]]
  $region73: #{ca_forward.1} parent=0
    _
  %s8 = ssub.s32 1, %s6
  %s9 = scalar_select 0, %s8, %s6
  $region1: #{ca_forward.1} parent=0
    #allocation2 [shape = 'u8[16384]{0}', space=vmem, size = 0x4000, scoped, tag = 'input window, operand 0']
    #allocation3 [shape = 's32[2]{0}', space=sflag, size = 0x8, scoped, tag = 'scoped memory for ca_forward.1']
    #allocation4 [shape = 's32[2]{0}', space=sflag, size = 0x8, scoped, tag = 'scoped memory for ca_forward.1']
    #allocation5 [shape = 'u8[4096]{0}', space=vmem, size = 0x1000, scoped, tag = 'input window, operand 1, single buffered']
    #allocation6 [shape = 's32[1]{0}', space=sflag, size = 0x4, scoped, tag = 'scoped memory for ca_forward.1']
    #allocation7 [shape = 'u8[512]{0}', space=vmem, size = 0x400, scoped, tag = 'input window, operand 2, single buffered']
    #allocation8 [shape = 'u8[1024]{0}', space=vmem, size = 0x400, scoped, tag = 'input window, operand 3, single buffered']
    #allocation9 [shape = 's32[1]{0}', space=sflag, size = 0x4, scoped, tag = 'scoped memory for ca_forward.1']
    #allocation10 [shape = 'u8[512]{0}', space=vmem, size = 0x400, scoped, tag = 'input window, operand 4, single buffered']
    #allocation11 [shape = 'u8[16384]{0}', space=vmem, size = 0x4000, scoped, tag = 'output window, operand 0']
    %10 = vsyncpa [#allocation3], 0
    %s11 = scalar_lea.sflag [#allocation3], 1
    %12 = vsyncpa %s11, 0
    %13 = vsyncpa [#allocation6], 0
    %14 = vsyncpa [#allocation9], 0
    %15 = vsyncpa [#allocation4], 0
    %s16 = scalar_lea.sflag [#allocation4], 1
    %17 = vsyncpa %s16, 0
    loop: start=0, step=1, limit=4
    $region2: #{ca_forward.1} parent=1 // loop_pre_header
      _
    $region3: #{ca_forward.1} parent=1 // loop_header
      %s19 = sphi 0, %s23
      %p20 = scmp.ge.s32.totalorder %s19, 4
      %s29 = sphi 0, %s31
      %s32 = sphi 0, %s29
      %s33 = sphi 0, %s32
      %s49 = sphi 0, %s33
      %s53 = sphi 0, %s53
      %s55 = sphi 0, %s53
      %s56 = sphi 0, %s55
      %s70 = sphi 0, %s56
      %s74 = sphi 0, %s74
      %s76 = sphi 0, %s74
      %s77 = sphi 0, %s76
      %s91 = sphi 0, %s77
      %s95 = sphi 0, %s95
      %s97 = sphi 0, %s95
      %s98 = sphi 0, %s97
      %s112 = sphi 0, %s98
      %s116 = sphi 0, %s116
      %s118 = sphi 0, %s116
      %s119 = sphi 0, %s118
      %s133 = sphi 0, %s119
      %s139 = sphi 0, %s141
      %s142 = sphi 0, %s139
      %s143 = sphi 0, %s142
      %s159 = sphi 0, %s143
    $region4: #{ca_forward.1} parent=1 // loop_header_branch
      %22 = sbr.rel (%p20) target = $region8
    $region5: #{ca_forward.1} parent=1 // loop_body
      %s24 = ssub.s32 %s19, 1
      %s25 = ssub.s32 %s19, 2
      %s26 = sadd.s32 %s19, 1
      %s27 = ssub.s32 %s19, %s26
      %p28 = scmp.eq.s32.totalorder %s27, 0
      %s30 = sadd.s32 %s29, 1
      %s31 = scalar_select %p28, %s29, %s30
      %p34 = pneg %p28
      %p35 = scmp.eq.s32.totalorder %s19, 1
      %p36 = por %p34, %p35
      %p37 = scmp.ne.s32.totalorder %s29, %s32
      %p38 = scmp.eq.s32.totalorder %s19, 0
      %p39 = por %p37, %p38
      %p40 = scmp.ne.s32.totalorder %s29, %s32
      %p41 = scmp.eq.s32.totalorder %s24, 1
      %p42 = por %p40, %p41
      %p43 = scmp.ne.s32.totalorder %s32, %s33
      %p44 = scmp.eq.s32.totalorder %s24, 0
      %p45 = por %p43, %p44
      %p46 = scmp.ne.s32.totalorder %s32, %s33
      %p47 = scmp.eq.s32.totalorder %s25, 1
      %p48 = por %p46, %p47
      %p50 = scmp.ne.s32.totalorder %s33, %s49
      %p51 = scmp.eq.s32.totalorder %s25, 0
      %p52 = por %p50, %p51
      %s54 = sadd.s32 %s53, 1
      %p57 = scmp.eq.s32.totalorder %s19, 1
      %p58 = scmp.ne.s32.totalorder %s53, %s55
      %p59 = scmp.eq.s32.totalorder %s19, 0
      %p60 = por %p58, %p59
      %p61 = scmp.ne.s32.totalorder %s53, %s55
      %p62 = scmp.eq.s32.totalorder %s24, 1
      %p63 = por %p61, %p62
      %p64 = scmp.ne.s32.totalorder %s55, %s56
      %p65 = scmp.eq.s32.totalorder %s24, 0
      %p66 = por %p64, %p65
      %p67 = scmp.ne.s32.totalorder %s55, %s56
      %p68 = scmp.eq.s32.totalorder %s25, 1
      %p69 = por %p67, %p68
      %p71 = scmp.ne.s32.totalorder %s56, %s70
      %p72 = scmp.eq.s32.totalorder %s25, 0
      %p73 = por %p71, %p72
      %s75 = sadd.s32 %s74, 1
      %p78 = scmp.eq.s32.totalorder %s19, 1
      %p79 = scmp.ne.s32.totalorder %s74, %s76
      %p80 = scmp.eq.s32.totalorder %s19, 0
      %p81 = por %p79, %p80
      %p82 = scmp.ne.s32.totalorder %s74, %s76
      %p83 = scmp.eq.s32.totalorder %s24, 1
      %p84 = por %p82, %p83
      %p85 = scmp.ne.s32.totalorder %s76, %s77
      %p86 = scmp.eq.s32.totalorder %s24, 0
      %p87 = por %p85, %p86
      %p88 = scmp.ne.s32.totalorder %s76, %s77
      %p89 = scmp.eq.s32.totalorder %s25, 1
      %p90 = por %p88, %p89
      %p92 = scmp.ne.s32.totalorder %s77, %s91
      %p93 = scmp.eq.s32.totalorder %s25, 0
      %p94 = por %p92, %p93
      %s96 = sadd.s32 %s95, 1
      %p99 = scmp.eq.s32.totalorder %s19, 1
      %p100 = scmp.ne.s32.totalorder %s95, %s97
      %p101 = scmp.eq.s32.totalorder %s19, 0
      %p102 = por %p100, %p101
      %p103 = scmp.ne.s32.totalorder %s95, %s97
      %p104 = scmp.eq.s32.totalorder %s24, 1
      %p105 = por %p103, %p104
      %p106 = scmp.ne.s32.totalorder %s97, %s98
      %p107 = scmp.eq.s32.totalorder %s24, 0
      %p108 = por %p106, %p107
      %p109 = scmp.ne.s32.totalorder %s97, %s98
      %p110 = scmp.eq.s32.totalorder %s25, 1
      %p111 = por %p109, %p110
      %p113 = scmp.ne.s32.totalorder %s98, %s112
      %p114 = scmp.eq.s32.totalorder %s25, 0
      %p115 = por %p113, %p114
      %s117 = sadd.s32 %s116, 1
      %p120 = scmp.eq.s32.totalorder %s19, 1
      %p121 = scmp.ne.s32.totalorder %s116, %s118
      %p122 = scmp.eq.s32.totalorder %s19, 0
      %p123 = por %p121, %p122
      %p124 = scmp.ne.s32.totalorder %s116, %s118
      %p125 = scmp.eq.s32.totalorder %s24, 1
      %p126 = por %p124, %p125
      %p127 = scmp.ne.s32.totalorder %s118, %s119
      %p128 = scmp.eq.s32.totalorder %s24, 0
      %p129 = por %p127, %p128
      %p130 = scmp.ne.s32.totalorder %s118, %s119
      %p131 = scmp.eq.s32.totalorder %s25, 1
      %p132 = por %p130, %p131
      %p134 = scmp.ne.s32.totalorder %s119, %s133
      %p135 = scmp.eq.s32.totalorder %s25, 0
      %p136 = por %p134, %p135
      %s137 = ssub.s32 %s19, %s26
      %p138 = scmp.eq.s32.totalorder %s137, 0
      %s140 = sadd.s32 %s139, 1
      %s141 = scalar_select %p138, %s139, %s140
      %p144 = pneg %p138
      %p145 = scmp.eq.s32.totalorder %s19, 1
      %p146 = por %p144, %p145
      %p147 = scmp.ne.s32.totalorder %s139, %s142
      %p148 = scmp.eq.s32.totalorder %s19, 0
      %p149 = por %p147, %p148
      %p150 = scmp.ne.s32.totalorder %s139, %s142
      %p151 = scmp.eq.s32.totalorder %s24, 1
      %p152 = por %p150, %p151
      %p153 = scmp.ne.s32.totalorder %s142, %s143
      %p154 = scmp.eq.s32.totalorder %s24, 0
      %p155 = por %p153, %p154
      %p156 = scmp.ne.s32.totalorder %s142, %s143
      %p157 = scmp.eq.s32.totalorder %s25, 1
      %p158 = por %p156, %p157
      %p160 = scmp.ne.s32.totalorder %s143, %s159
      %p161 = scmp.eq.s32.totalorder %s25, 0
      %p162 = por %p160, %p161
      %p163 = scmp.le.s32.totalorder 1, %s19
      %p164 = scmp.lt.s32.totalorder %s19, 3
      %p165 = pnand %p163, %p164
      %p166 = pneg %p165
      // Predicated region
      $region9: #{ca_forward.1} parent=5 // pred_check
        _
      $region10: #{ca_forward.1} parent=5 // pred_check_branch
        %168 = sbr.rel (%p165) target = $region12
      $region11: #{ca_forward.1} parent=5 // pred_region
        %s169 = ssub.s32 %s19, 1
        // Predicated region
        $region13: #{ca_forward.1} parent=11 // pred_check
          %p170 = pneg %p66
        $region14: #{ca_forward.1} parent=11 // pred_check_branch
          %172 = sbr.rel (%p170) target = $region16
        $region15: #{ca_forward.1} parent=11 // pred_region
          %s174 = ssub.s32 128, 128
          %175 = vsyncadd [#allocation6], %s174
          %s177 = sshll.u32 [#allocation5], 4
          %s178 = int_to_ptr.vmem [resolvable:$true] %s177
          %180 = dma.hbm_to_vmem [thread:$0]  %s1, 128, %s178, [#allocation6]
        $region16: #{ca_forward.1} parent=11 // pred_fallthru
          _
        // Predicated region
        $region17: #{ca_forward.1} parent=11 // pred_check
          %p181 = pneg %p87
        $region18: #{ca_forward.1} parent=11 // pred_check_branch
          %183 = sbr.rel (%p181) target = $region20
        $region19: #{ca_forward.1} parent=11 // pred_region
          %s185 = ssub.s32 16, 16
          %186 = vsyncadd [#allocation6], %s185
          %s188 = sshll.u32 [#allocation7], 4
          %s189 = int_to_ptr.vmem [resolvable:$true] %s188
          %191 = dma.hbm_to_vmem [thread:$0]  %s2, 16, %s189, [#allocation6]
        $region20: #{ca_forward.1} parent=11 // pred_fallthru
          _
        // Predicated region
        $region21: #{ca_forward.1} parent=11 // pred_check
          %p192 = pneg %p108
        $region22: #{ca_forward.1} parent=11 // pred_check_branch
          %194 = sbr.rel (%p192) target = $region24
        $region23: #{ca_forward.1} parent=11 // pred_region
          %s196 = ssub.s32 32, 32
          %197 = vsyncadd [#allocation9], %s196
          %s199 = sshll.u32 [#allocation8], 4
          %s200 = int_to_ptr.vmem [resolvable:$true] %s199
          %202 = dma.hbm_to_vmem [thread:$0]  %s3, 32, %s200, [#allocation9]
        $region24: #{ca_forward.1} parent=11 // pred_fallthru
          _
        // Predicated region
        $region25: #{ca_forward.1} parent=11 // pred_check
          %p203 = pneg %p129
        $region26: #{ca_forward.1} parent=11 // pred_check_branch
          %205 = sbr.rel (%p203) target = $region28
        $region27: #{ca_forward.1} parent=11 // pred_region
          %s207 = ssub.s32 16, 16
          %208 = vsyncadd [#allocation9], %s207
          %s210 = sshll.u32 [#allocation10], 4
          %s211 = int_to_ptr.vmem [resolvable:$true] %s210
          %213 = dma.hbm_to_vmem [thread:$0]  %s4, 16, %s211, [#allocation9]
        $region28: #{ca_forward.1} parent=11 // pred_fallthru
          _
      $region12: #{ca_forward.1} parent=5 // pred_fallthru
        _
      %p214 = scmp.lt.s32.totalorder %s19, 2
      // Predicated region
      $region29: #{ca_forward.1} parent=5 // pred_check
        %p215 = pneg %p214
      $region30: #{ca_forward.1} parent=5 // pred_check_branch
        %217 = sbr.rel (%p215) target = $region32
      $region31: #{ca_forward.1} parent=5 // pred_region
        // Predicated region
        $region33: #{ca_forward.1} parent=31 // pred_check
          %p218 = pneg %p39
        $region34: #{ca_forward.1} parent=31 // pred_check_branch
          %220 = sbr.rel (%p218) target = $region36
        $region35: #{ca_forward.1} parent=31 // pred_region
          %s221 = sand.u32 %s29, 1
          %s222 = scalar_lea.sflag [#allocation3], %s221
          %s223 = sand.u32 %s29, 1
          %s224 = smul.addr %s223, 16
          %s225 = scalar_lea.vmem [#allocation2], %s224
          %s227 = ssub.s32 256, 256
          %228 = vsyncadd %s222, %s227
          %s229 = smul.addr %s19, 2
          %s230 = smul.addr %s229, 128
          %s231 = scalar_lea.hbm %s0, %s230
          %s233 = sshll.u32 %s225, 4
          %s234 = int_to_ptr.vmem [resolvable:$true] %s233
          %236 = dma.hbm_to_vmem [thread:$0]  %s231, 256, %s234, %s222
        $region36: #{ca_forward.1} parent=31 // pred_fallthru
          _
      $region32: #{ca_forward.1} parent=5 // pred_fallthru
        _
      %p237 = scmp.le.s32.totalorder 1, %s19
      %p238 = scmp.lt.s32.totalorder %s19, 3
      %p239 = pnand %p237, %p238
      %p240 = pneg %p239
      // Predicated region
      $region37: #{ca_forward.1} parent=5 // pred_check
        _
      $region38: #{ca_forward.1} parent=5 // pred_check_branch
        %242 = sbr.rel (%p239) target = $region40
      $region39: #{ca_forward.1} parent=5 // pred_region
        %s243 = ssub.s32 %s19, 1
        %s244 = sand.u32 %s32, 1
        %s245 = scalar_lea.sflag [#allocation3], %s244
        %s246 = sand.u32 %s32, 1
        %s247 = smul.addr %s246, 16
        %s248 = scalar_lea.vmem [#allocation2], %s247
        // Predicated region
        $region41: #{ca_forward.1} parent=39 // pred_check
          %p249 = pneg %p45
        $region42: #{ca_forward.1} parent=39 // pred_check_branch
          %251 = sbr.rel (%p249) target = $region44
        $region43: #{ca_forward.1} parent=39 // pred_region
          %252 = dma.done %s245, 256
        $region44: #{ca_forward.1} parent=39 // pred_fallthru
          _
        // Predicated region
        $region45: #{ca_forward.1} parent=39 // pred_check
          %p253 = pneg %p66
        $region46: #{ca_forward.1} parent=39 // pred_check_branch
          %255 = sbr.rel (%p253) target = $region48
        $region47: #{ca_forward.1} parent=39 // pred_region
          %256 = dma.done [#allocation6], 128
        $region48: #{ca_forward.1} parent=39 // pred_fallthru
          _
        // Predicated region
        $region49: #{ca_forward.1} parent=39 // pred_check
          %p257 = pneg %p87
        $region50: #{ca_forward.1} parent=39 // pred_check_branch
          %259 = sbr.rel (%p257) target = $region52
        $region51: #{ca_forward.1} parent=39 // pred_region
          %260 = dma.done [#allocation6], 16
        $region52: #{ca_forward.1} parent=39 // pred_fallthru
          _
        // Predicated region
        $region53: #{ca_forward.1} parent=39 // pred_check
          %p261 = pneg %p108
        $region54: #{ca_forward.1} parent=39 // pred_check_branch
          %263 = sbr.rel (%p261) target = $region56
        $region55: #{ca_forward.1} parent=39 // pred_region
          %264 = dma.done [#allocation9], 32
        $region56: #{ca_forward.1} parent=39 // pred_fallthru
          _
        // Predicated region
        $region57: #{ca_forward.1} parent=39 // pred_check
          %p265 = pneg %p129
        $region58: #{ca_forward.1} parent=39 // pred_check_branch
          %267 = sbr.rel (%p265) target = $region60
        $region59: #{ca_forward.1} parent=39 // pred_region
          %268 = dma.done [#allocation9], 16
        $region60: #{ca_forward.1} parent=39 // pred_fallthru
          _
        %s269 = sand.u32 %s32, 1
        %s270 = scalar_lea.sflag [#allocation3], %s269
        %s271 = sand.u32 %s32, 1
        %s272 = smul.addr %s271, 16
        %s273 = scalar_lea.vmem [#allocation2], %s272
        %p274 = pneg %p45
        %p275 = pneg %p42
        %p276 = pneg %p66
        %p277 = pneg %p63
        %p278 = pneg %p87
        %p279 = pneg %p84
        %p280 = pneg %p108
        %p281 = pneg %p105
        %p282 = pneg %p129
        %p283 = pneg %p126
        %p284 = pneg %p155
        %p285 = pneg %p152
        %s286 = sand.u32 %s142, 1
        %s287 = scalar_lea.sflag [#allocation4], %s286
        %s288 = sand.u32 %s142, 1
        %s289 = smul.addr %s288, 16
        %s290 = scalar_lea.vmem [#allocation11], %s289
        %v291 = vld [vmem:[%s248] sm:$0xff]
        %v292 = vld [vmem:[%s248 + $0x8] sm:$0xff]
        %v293 = vmax.f32 %v291, %v292
        %294 = vmax.xlane.f32.xlu0 %v293
        %v295 = vpop.xlane.xlu0 %294
        %v296 = vadd.f32 %v291, %v292
        %297 = vadd.xlane.f32.xlu0 %v296
        %v298 = vpop.xlane.xlu0 %297
        %v299 = vmul.f32 %v298, 0.00390625
        %v300 = vld [vmem:[#allocation5] sm:$0xff]
        %v301 = vld [vmem:[#allocation7] sm:$0x1]
        %v302 = vld [vmem:[#allocation8] sm:$0x3]
        %v303 = vld [vmem:[#allocation10] sm:$0x1]
        %v305 = vlaneseq
        %v306 = vand.u32 %v305, 127
        %v307 = vlaneseq
        %v308 = vshrl.u32 %v307, 7
        %v309 = vsub.s32 %v306, %v308
        %v310 = vrot.slane %v295, %v309
        %vm311 = vcmask 64512
        %v312 = vsel %vm311, %v310, 0
        %314 = vmatprep.subr.mxu0 0.0
        %315 = vmatpush1.msra.mxu0 %v300
        %316 = vmatprep.subr.mxu0 0.0
        %317 = vmatpush1.msra.mxu0 0.0
        %318 = vmatprep.subr.mxu0 0.0
        %319 = vmatpush1.msra.mxu0 0.0
        %320 = vmatprep.subr.mxu0 0.0
        %321 = vmatpush1.msra.mxu0 0.0
        %322 = vmatprep.subr.mxu0 0.0
        %323 = vmatpush1.msra.mxu0 0.0
        %324 = vmatprep.subr.mxu0 0.0
        %325 = vmatpush1.msra.mxu0 0.0
        %326 = vmatprep.subr.mxu0 0.0
        %327 = vmatpush1.msra.mxu0 0.0
        %328 = vmatprep.subr.mxu0 0.0
        %329 = vmatpush1.msra.mxu0 0.0
        %330 = vmatprep.subr.mxu0 0.0
        %331 = vmatpush1.msra.mxu0 0.0
        %332 = vmatprep.subr.mxu0 0.0
        %333 = vmatpush1.msra.mxu0 0.0
        %334 = vmatprep.subr.mxu0 0.0
        %335 = vmatpush1.msra.mxu0 0.0
        %336 = vmatprep.subr.mxu0 0.0
        %337 = vmatpush1.msra.mxu0 0.0
        %338 = vmatprep.subr.mxu0 0.0
        %339 = vmatpush1.msra.mxu0 0.0
        %340 = vmatprep.subr.mxu0 0.0
        %341 = vmatpush1.msra.mxu0 0.0
        %342 = vmatprep.subr.mxu0 0.0
        %343 = vmatpush1.msra.mxu0 0.0
        %344 = vmatprep.subr.mxu0 0.0
        %345 = vmatpush1.msra.mxu0 0.0
        %346 = vmatprep.subr.mxu0 0.0
        %347 = vmatpush1.msra.mxu0 0.0
        %348 = vmatprep.subr.mxu0 0.0
        %349 = vmatpush1.msra.mxu0 0.0
        %350 = vmatprep.subr.mxu0 0.0
        %351 = vmatpush1.msra.mxu0 0.0
        %352 = vmatprep.subr.mxu0 0.0
        %353 = vmatpush1.msra.mxu0 0.0
        %354 = vmatprep.subr.mxu0 0.0
        %355 = vmatpush1.msra.mxu0 0.0
        %356 = vmatprep.subr.mxu0 0.0
        %357 = vmatpush1.msra.mxu0 0.0
        %358 = vmatprep.subr.mxu0 0.0
        %359 = vmatpush1.msra.mxu0 0.0
        %360 = vmatprep.subr.mxu0 0.0
        %361 = vmatpush1.msra.mxu0 0.0
        %362 = vmatprep.subr.mxu0 0.0
        %363 = vmatpush1.msra.mxu0 0.0
        %364 = vmatprep.subr.mxu0 0.0
        %365 = vmatpush1.msra.mxu0 0.0
        %366 = vmatprep.subr.mxu0 0.0
        %367 = vmatpush1.msra.mxu0 0.0
        %368 = vmatprep.subr.mxu0 0.0
        %369 = vmatpush1.msra.mxu0 0.0
        %370 = vmatprep.subr.mxu0 0.0
        %371 = vmatpush1.msra.mxu0 0.0
        %372 = vmatprep.subr.mxu0 0.0
        %373 = vmatpush1.msra.mxu0 0.0
        %374 = vmatprep.subr.mxu0 0.0
        %375 = vmatpush1.msra.mxu0 0.0
        %376 = vmatprep.subr.mxu0 0.0
        %377 = vmatpush1.msra.mxu0 0.0
        %378 = vmatprep.mubr.f32.mxu0 0.0
        %379 = vmatmul.mubr.f32.gmra.mrb[0].mxu0 %v312
        %v380 = vpop.f32.mrb[0].mxu0
        %v381 = vadd.f32 %v301, %v380
        %v382 = vpop.f32.mrb[0].mxu0
        %383 = vdwg.mxu0
        %v384 = vmax.f32 %v381, 0.0
        %vm385 = vcmask 15360
        %v387 = vsel %vm385, %v384, 0
        %vm389 = vcmask 1041408
        %v391 = vsel %vm389, %v302, 0
        %393 = vmatprep.subr.mxu0 0.0
        %394 = vmatpush1.msra.mxu0 %v391
        %395 = vmatprep.subr.mxu0 0.0
        %396 = vmatpush1.msra.mxu0 0.0
        %397 = vmatprep.subr.mxu0 0.0
        %398 = vmatpush1.msra.mxu0 0.0
        %399 = vmatprep.subr.mxu0 0.0
        %400 = vmatpush1.msra.mxu0 0.0
        %401 = vmatprep.subr.mxu0 0.0
        %402 = vmatpush1.msra.mxu0 0.0
        %403 = vmatprep.subr.mxu0 0.0
        %404 = vmatpush1.msra.mxu0 0.0
        %405 = vmatprep.subr.mxu0 0.0
        %406 = vmatpush1.msra.mxu0 0.0
        %407 = vmatprep.subr.mxu0 0.0
        %408 = vmatpush1.msra.mxu0 0.0
        %409 = vmatprep.subr.mxu0 0.0
        %410 = vmatpush1.msra.mxu0 0.0
        %411 = vmatprep.subr.mxu0 0.0
        %412 = vmatpush1.msra.mxu0 0.0
        %413 = vmatprep.subr.mxu0 0.0
        %414 = vmatpush1.msra.mxu0 0.0
        %415 = vmatprep.subr.mxu0 0.0
        %416 = vmatpush1.msra.mxu0 0.0
        %417 = vmatprep.subr.mxu0 0.0
        %418 = vmatpush1.msra.mxu0 0.0
        %419 = vmatprep.subr.mxu0 0.0
        %420 = vmatpush1.msra.mxu0 0.0
        %421 = vmatprep.subr.mxu0 0.0
        %422 = vmatpush1.msra.mxu0 0.0
        %423 = vmatprep.subr.mxu0 0.0
        %424 = vmatpush1.msra.mxu0 0.0
        %425 = vmatprep.subr.mxu0 0.0
        %426 = vmatpush1.msra.mxu0 0.0
        %427 = vmatprep.subr.mxu0 0.0
        %428 = vmatpush1.msra.mxu0 0.0
        %429 = vmatprep.subr.mxu0 0.0
        %430 = vmatpush1.msra.mxu0 0.0
        %431 = vmatprep.subr.mxu0 0.0
        %432 = vmatpush1.msra.mxu0 0.0
        %433 = vmatprep.subr.mxu0 0.0
        %434 = vmatpush1.msra.mxu0 0.0
        %435 = vmatprep.subr.mxu0 0.0
        %436 = vmatpush1.msra.mxu0 0.0
        %437 = vmatprep.subr.mxu0 0.0
        %438 = vmatpush1.msra.mxu0 0.0
        %439 = vmatprep.subr.mxu0 0.0
        %440 = vmatpush1.msra.mxu0 0.0
        %441 = vmatprep.subr.mxu0 0.0
        %442 = vmatpush1.msra.mxu0 0.0
        %443 = vmatprep.subr.mxu0 0.0
        %444 = vmatpush1.msra.mxu0 0.0
        %445 = vmatprep.subr.mxu0 0.0
        %446 = vmatpush1.msra.mxu0 0.0
        %447 = vmatprep.subr.mxu0 0.0
        %448 = vmatpush1.msra.mxu0 0.0
        %449 = vmatprep.subr.mxu0 0.0
        %450 = vmatpush1.msra.mxu0 0.0
        %451 = vmatprep.subr.mxu0 0.0
        %452 = vmatpush1.msra.mxu0 0.0
        %453 = vmatprep.subr.mxu0 0.0
        %454 = vmatpush1.msra.mxu0 0.0
        %455 = vmatprep.subr.mxu0 0.0
        %456 = vmatpush1.msra.mxu0 0.0
        %457 = vmatprep.mubr.f32.mxu0 0.0
        %458 = vmatmul.mubr.f32.gmra.mrb[0].mxu0 %v387
        %v459 = vpop.f32.mrb[0].mxu0
        %v460 = vadd.f32 %v303, %v459
        %v461 = vpop.f32.mrb[0].mxu0
        %462 = vdwg.mxu0
        %v464 = vlaneseq
        %v465 = vshrl.u32 %v464, 7
        %v466 = vsub.s32 %v306, %v465
        %v467 = vrot.slane %v299, %v466
        %v468 = vsel %vm311, %v467, 0
        %470 = vmatprep.subr.mxu0 0.0
        %471 = vmatpush1.msra.mxu0 %v300
        %472 = vmatprep.subr.mxu0 0.0
        %473 = vmatpush1.msra.mxu0 0.0
        %474 = vmatprep.subr.mxu0 0.0
        %475 = vmatpush1.msra.mxu0 0.0
        %476 = vmatprep.subr.mxu0 0.0
        %477 = vmatpush1.msra.mxu0 0.0
        %478 = vmatprep.subr.mxu0 0.0
        %479 = vmatpush1.msra.mxu0 0.0
        %480 = vmatprep.subr.mxu0 0.0
        %481 = vmatpush1.msra.mxu0 0.0
        %482 = vmatprep.subr.mxu0 0.0
        %483 = vmatpush1.msra.mxu0 0.0
        %484 = vmatprep.subr.mxu0 0.0
        %485 = vmatpush1.msra.mxu0 0.0
        %486 = vmatprep.subr.mxu0 0.0
        %487 = vmatpush1.msra.mxu0 0.0
        %488 = vmatprep.subr.mxu0 0.0
        %489 = vmatpush1.msra.mxu0 0.0
        %490 = vmatprep.subr.mxu0 0.0
        %491 = vmatpush1.msra.mxu0 0.0
        %492 = vmatprep.subr.mxu0 0.0
        %493 = vmatpush1.msra.mxu0 0.0
        %494 = vmatprep.subr.mxu0 0.0
        %495 = vmatpush1.msra.mxu0 0.0
        %496 = vmatprep.subr.mxu0 0.0
        %497 = vmatpush1.msra.mxu0 0.0
        %498 = vmatprep.subr.mxu0 0.0
        %499 = vmatpush1.msra.mxu0 0.0
        %500 = vmatprep.subr.mxu0 0.0
        %501 = vmatpush1.msra.mxu0 0.0
        %502 = vmatprep.subr.mxu0 0.0
        %503 = vmatpush1.msra.mxu0 0.0
        %504 = vmatprep.subr.mxu0 0.0
        %505 = vmatpush1.msra.mxu0 0.0
        %506 = vmatprep.subr.mxu0 0.0
        %507 = vmatpush1.msra.mxu0 0.0
        %508 = vmatprep.subr.mxu0 0.0
        %509 = vmatpush1.msra.mxu0 0.0
        %510 = vmatprep.subr.mxu0 0.0
        %511 = vmatpush1.msra.mxu0 0.0
        %512 = vmatprep.subr.mxu0 0.0
        %513 = vmatpush1.msra.mxu0 0.0
        %514 = vmatprep.subr.mxu0 0.0
        %515 = vmatpush1.msra.mxu0 0.0
        %516 = vmatprep.subr.mxu0 0.0
        %517 = vmatpush1.msra.mxu0 0.0
        %518 = vmatprep.subr.mxu0 0.0
        %519 = vmatpush1.msra.mxu0 0.0
        %520 = vmatprep.subr.mxu0 0.0
        %521 = vmatpush1.msra.mxu0 0.0
        %522 = vmatprep.subr.mxu0 0.0
        %523 = vmatpush1.msra.mxu0 0.0
        %524 = vmatprep.subr.mxu0 0.0
        %525 = vmatpush1.msra.mxu0 0.0
        %526 = vmatprep.subr.mxu0 0.0
        %527 = vmatpush1.msra.mxu0 0.0
        %528 = vmatprep.subr.mxu0 0.0
        %529 = vmatpush1.msra.mxu0 0.0
        %530 = vmatprep.subr.mxu0 0.0
        %531 = vmatpush1.msra.mxu0 0.0
        %532 = vmatprep.subr.mxu0 0.0
        %533 = vmatpush1.msra.mxu0 0.0
        %534 = vmatprep.mubr.f32.mxu0 0.0
        %535 = vmatmul.mubr.f32.gmra.mrb[0].mxu0 %v468
        %v536 = vpop.f32.mrb[0].mxu0
        %v537 = vadd.f32 %v301, %v536
        %v538 = vpop.f32.mrb[0].mxu0
        %539 = vdwg.mxu0
        %v540 = vmax.f32 %v537, 0.0
        %v542 = vsel %vm385, %v540, 0
        %544 = vmatprep.subr.mxu0 0.0
        %545 = vmatpush1.msra.mxu0 %v391
        %546 = vmatprep.subr.mxu0 0.0
        %547 = vmatpush1.msra.mxu0 0.0
        %548 = vmatprep.subr.mxu0 0.0
        %549 = vmatpush1.msra.mxu0 0.0
        %550 = vmatprep.subr.mxu0 0.0
        %551 = vmatpush1.msra.mxu0 0.0
        %552 = vmatprep.subr.mxu0 0.0
        %553 = vmatpush1.msra.mxu0 0.0
        %554 = vmatprep.subr.mxu0 0.0
        %555 = vmatpush1.msra.mxu0 0.0
        %556 = vmatprep.subr.mxu0 0.0
        %557 = vmatpush1.msra.mxu0 0.0
        %558 = vmatprep.subr.mxu0 0.0
        %559 = vmatpush1.msra.mxu0 0.0
        %560 = vmatprep.subr.mxu0 0.0
        %561 = vmatpush1.msra.mxu0 0.0
        %562 = vmatprep.subr.mxu0 0.0
        %563 = vmatpush1.msra.mxu0 0.0
        %564 = vmatprep.subr.mxu0 0.0
        %565 = vmatpush1.msra.mxu0 0.0
        %566 = vmatprep.subr.mxu0 0.0
        %567 = vmatpush1.msra.mxu0 0.0
        %568 = vmatprep.subr.mxu0 0.0
        %569 = vmatpush1.msra.mxu0 0.0
        %570 = vmatprep.subr.mxu0 0.0
        %571 = vmatpush1.msra.mxu0 0.0
        %572 = vmatprep.subr.mxu0 0.0
        %573 = vmatpush1.msra.mxu0 0.0
        %574 = vmatprep.subr.mxu0 0.0
        %575 = vmatpush1.msra.mxu0 0.0
        %576 = vmatprep.subr.mxu0 0.0
        %577 = vmatpush1.msra.mxu0 0.0
        %578 = vmatprep.subr.mxu0 0.0
        %579 = vmatpush1.msra.mxu0 0.0
        %580 = vmatprep.subr.mxu0 0.0
        %581 = vmatpush1.msra.mxu0 0.0
        %582 = vmatprep.subr.mxu0 0.0
        %583 = vmatpush1.msra.mxu0 0.0
        %584 = vmatprep.subr.mxu0 0.0
        %585 = vmatpush1.msra.mxu0 0.0
        %586 = vmatprep.subr.mxu0 0.0
        %587 = vmatpush1.msra.mxu0 0.0
        %588 = vmatprep.subr.mxu0 0.0
        %589 = vmatpush1.msra.mxu0 0.0
        %590 = vmatprep.subr.mxu0 0.0
        %591 = vmatpush1.msra.mxu0 0.0
        %592 = vmatprep.subr.mxu0 0.0
        %593 = vmatpush1.msra.mxu0 0.0
        %594 = vmatprep.subr.mxu0 0.0
        %595 = vmatpush1.msra.mxu0 0.0
        %596 = vmatprep.subr.mxu0 0.0
        %597 = vmatpush1.msra.mxu0 0.0
        %598 = vmatprep.subr.mxu0 0.0
        %599 = vmatpush1.msra.mxu0 0.0
        %600 = vmatprep.subr.mxu0 0.0
        %601 = vmatpush1.msra.mxu0 0.0
        %602 = vmatprep.subr.mxu0 0.0
        %603 = vmatpush1.msra.mxu0 0.0
        %604 = vmatprep.subr.mxu0 0.0
        %605 = vmatpush1.msra.mxu0 0.0
        %606 = vmatprep.subr.mxu0 0.0
        %607 = vmatpush1.msra.mxu0 0.0
        %608 = vmatprep.mubr.f32.mxu0 0.0
        %609 = vmatmul.mubr.f32.gmra.mrb[0].mxu0 %v542
        %v610 = vpop.f32.mrb[0].mxu0
        %v611 = vadd.f32 %v303, %v610
        %v612 = vpop.f32.mrb[0].mxu0
        %613 = vdwg.mxu0
        %v614 = vadd.f32 %v460, %v611
        %v615 = vxor.u32 %v614, 2147483648
        %v616 = vmul.f32 %v615, 1.442695
        %v617 = vpow.pop %v616
        %v618 = vadd.f32 %v617, 1.0
        %v619 = vrcp.pop %v618
        %v620 = vmul.f32 1.0, %v619
        %v621 = vlaneseq
        %v622 = vshrl.u32 %v621, 7
        %v623 = vsub.s32 0, %v622
        %v624 = vrot.slane %v620, %v623
        %626 = vbcast.lane.b32.xlu0 %v624, 256
        %v627 = vpop.permute.xlu0 %626
        %v628 = vmul.f32 %v291, %v627
        %v629 = vmul.f32 %v292, %v627
        %630 = vst [vmem:[%s290] sm:$0xff] %v628
        %631 = vst [vmem:[%s290 + $0x8] sm:$0xff] %v629
        %s632 = sand.u32 %s142, 1
        %s633 = scalar_lea.sflag [#allocation4], %s632
        %s634 = sand.u32 %s142, 1
        %s635 = smul.addr %s634, 16
        %s636 = scalar_lea.vmem [#allocation11], %s635
        // Predicated region
        $region61: #{ca_forward.1} parent=39 // pred_check
          %p637 = pneg %p152
        $region62: #{ca_forward.1} parent=39 // pred_check_branch
          %639 = sbr.rel (%p637) target = $region64
        $region63: #{ca_forward.1} parent=39 // pred_region
          %s641 = ssub.s32 256, 256
          %642 = vsyncadd %s633, %s641
          %s643 = smul.addr %s24, 2
          %s644 = smul.addr %s643, 128
          %s645 = scalar_lea.hbm %s5, %s644
          %s647 = sshll.u32 %s636, 4
          %s648 = int_to_ptr.vmem [resolvable:$true] %s647
          %650 = dma.vmem_to_hbm [thread:$0]  %s648, 256, %s645, %s633
        $region64: #{ca_forward.1} parent=39 // pred_fallthru
          _
      $region40: #{ca_forward.1} parent=5 // pred_fallthru
        _
      %p651 = scmp.le.s32.totalorder 2, %s19
      // Predicated region
      $region65: #{ca_forward.1} parent=5 // pred_check
        %p652 = pneg %p651
      $region66: #{ca_forward.1} parent=5 // pred_check_branch
        %654 = sbr.rel (%p652) target = $region68
      $region67: #{ca_forward.1} parent=5 // pred_region
        %s655 = ssub.s32 %s19, 2
        // Predicated region
        $region69: #{ca_forward.1} parent=67 // pred_check
          %p656 = pneg %p158
        $region70: #{ca_forward.1} parent=67 // pred_check_branch
          %658 = sbr.rel (%p656) target = $region72
        $region71: #{ca_forward.1} parent=67 // pred_region
          %s659 = sand.u32 %s143, 1
          %s660 = scalar_lea.sflag [#allocation4], %s659
          %s661 = sand.u32 %s143, 1
          %s662 = smul.addr %s661, 16
          %s663 = scalar_lea.vmem [#allocation11], %s662
          %664 = dma.done %s660, 256
        $region72: #{ca_forward.1} parent=67 // pred_fallthru
          _
      $region68: #{ca_forward.1} parent=5 // pred_fallthru
        _
    $region6: #{ca_forward.1} parent=1 // loop_footer
      %s23 = sadd.s32 1, %s19
    $region7: #{ca_forward.1} parent=1 // loop_footer_branch
      %18 = sbr.rel target = $region3
    $region8: #{ca_forward.1} parent=1 // loop_exit
      _
    %665 = vsyncpa [#allocation3], 1
    %s666 = scalar_lea.sflag [#allocation3], 1
    %667 = vsyncpa %s666, 1
    %668 = vsyncpa [#allocation6], 1
    %669 = vsyncpa [#allocation9], 1
    %670 = vsyncpa [#allocation4], 1
    %s671 = scalar_lea.sflag [#allocation4], 1
    %672 = vsyncpa %s671, 1

</llo_original>
